<compile_context>
chip_gen: v7x
topology: tpu7x:2x2x1
jax: 0.10.0
libtpu: 0.0.40
codegen_flags: <defaults>
</compile_context>

<pallas_src>
import jax
import jax.numpy as jnp
from jax import lax
from jax.experimental import pallas as pl
from jax.experimental.pallas import tpu as pltpu

EPS = 1e-08
NUM_CLASSES = 5   # classes N, B, W, T, Z
LANES = 128       # TPU lane width

# 1024 rows x 128 lanes = 128K elements per class per tile:
#   pred block  5*1024*128*4 B (f32)  = 2.50 MiB
#   GT   block  5*1024*128*2 B (bf16) = 1.25 MiB
#   x2 double-buffering               = 7.50 MiB  (safe on every generation)
# TODO(synk): on v6e the tile could be raised to 2048-4096 rows with
# vmem_limit_bytes≈48MiB for a small extra win; keep the conservative default
# so the same kernel also respects v7x's 64 MiB physical VMEM.
_MAX_TILE_ROWS = 1024


def _make_dice_kernel(tile_rows: int, total_rows: int, mask_tail: bool):
    """Builds the streaming-reduction kernel for a given static tiling."""

    def kernel(pred_ref, gt_ref, out_ref, inter_acc, sums_acc):
        # pred_ref / gt_ref blocks: (1, C, tile_rows, 128)
        # out_ref block:            (1, 2, C, 128)   lane-dense per-batch partials
        # inter_acc / sums_acc:     (C, 128) f32 scratch, resident across tiles
        t = pl.program_id(1)

        @pl.when(t == 0)
        def _init():
            inter_acc[...] = jnp.zeros_like(inter_acc)
            sums_acc[...] = jnp.zeros_like(sums_acc)

        p = pred_ref[0].astype(jnp.float32)      # (C, TR, 128)
        g = gt_ref[0].astype(jnp.float32)        # (C, TR, 128), bf16 -> f32 once

        pg = p * g                               # intersection terms
        ps = p + g                               # "sum" terms

        if mask_tail:
            # The last tile may run past the real row count; the out-of-range
            # part of the VMEM block is unspecified and must be zeroed before
            # accumulating.  Only emitted when a tail actually exists.
            remaining = total_rows - t * tile_rows
            row_ids = lax.broadcasted_iota(jnp.int32, (1, tile_rows, LANES), 1)
            valid = row_ids < remaining
            pg = jnp.where(valid, pg, 0.0)
            ps = jnp.where(valid, ps, 0.0)

        # Lane-wide partial accumulation: carried dep = one vadd per lane vreg;
        # the cross-lane reduce happens once, outside the kernel.
        inter_acc[...] += jnp.sum(pg, axis=1)    # (C, 128)
        sums_acc[...] += jnp.sum(ps, axis=1)     # (C, 128)

        @pl.when(t == pl.num_programs(1) - 1)
        def _finalize():
            out_ref[0, 0, :, :] = inter_acc[...]
            out_ref[0, 1, :, :] = sums_acc[...]

    return kernel


def compute_dice_one_hot(pred, gt, *, max_tile_rows: int = _MAX_TILE_ROWS):
    """pred, GT: (B, 5, H, W) NCHW.  GT may be float32 or bfloat16 (hard one-hot
    labels are exact in bf16).  Returns the scalar Dice_score of the module."""
    B, C, H, W = pred.shape
    assert C == NUM_CLASSES
    assert gt.shape == pred.shape

    hw = H * W
    rows = pl.cdiv(hw, LANES)
    hw_padded = rows * LANES

    pred_r = pred.reshape(B, C, hw)
    gt_r = gt.reshape(B, C, hw)
    if hw_padded != hw:
        # Rare fallback (H*W not a multiple of 128): zero-pad the flattened
        # spatial axis.  Zeros contribute nothing to inter or sums, so this is
        # exact; it costs one extra copy of each input.
        pad = ((0, 0), (0, 0), (0, hw_padded - hw))
        pred_r = jnp.pad(pred_r, pad)
        gt_r = jnp.pad(gt_r, pad)

    # Lane-packed layout: HW fills (sublane, lane); the 5-class axis is a
    # leading block dim, so no sublane padding anywhere in the streamed data.
    pred_r = pred_r.reshape(B, C, rows, LANES)
    gt_r = gt_r.reshape(B, C, rows, LANES)

    # Sublane-aligned tile (16 covers bf16 packing, and is a multiple of 8 for
    # f32); a single full-extent tile is always legal regardless of alignment.
    sublane = 16 if (pred_r.dtype.itemsize < 4 or gt_r.dtype.itemsize < 4) else 8
    aligned_max = max(sublane, (max_tile_rows // sublane) * sublane)
    tile_rows = rows if rows <= aligned_max else aligned_max
    n_t = pl.cdiv(rows, tile_rows)
    mask_tail = (rows % tile_rows) != 0

    kernel = _make_dice_kernel(tile_rows, rows, mask_tail)

    # TODO(synk): when B == 1 on v7x, additionally split the row range across a
    # leading size-2 "parallel" axis to use both TensorCores.
    partials = pl.pallas_call(
        kernel,
        out_shape=jax.ShapeDtypeStruct((B, 2, C, LANES), jnp.float32),
        grid_spec=pltpu.PrefetchScalarGridSpec(
            num_scalar_prefetch=0,
            grid=(B, n_t),
            in_specs=[
                pl.BlockSpec((1, C, tile_rows, LANES), lambda b, t: (b, 0, t, 0)),
                pl.BlockSpec((1, C, tile_rows, LANES), lambda b, t: (b, 0, t, 0)),
            ],
            out_specs=pl.BlockSpec((1, 2, C, LANES), lambda b, t: (b, 0, 0, 0)),
            scratch_shapes=[
                pltpu.VMEM((C, LANES), jnp.float32),   # per-class lane-wise inter
                pltpu.VMEM((C, LANES), jnp.float32),   # per-class lane-wise sums
            ],
        ),
        compiler_params=pltpu.CompilerParams(
            # Each batch owns its accumulator + output block -> "parallel"
            # (megacore split on v7x); the tile axis is a reduction -> "arbitrary".
            dimension_semantics=("parallel", "arbitrary"),
        ),
    )(pred_r, gt_r)

    # Tiny epilogue in plain JAX: cross-lane + cross-batch reduce (ratio of
    # sums, exactly as DicesToDice), dice formula, class-0 exclusion.
    totals = jnp.sum(partials, axis=(0, 3))             # (2, C)
    dice = (2.0 * totals[0] + EPS) / (totals[1] + EPS)   # (C,)
    return jnp.mean(dice[1:NUM_CLASSES])


def _reference(pred, gt):
    # Pure-JAX reference mirroring the PyTorch module (f32).
    pred = pred.astype(jnp.float32)
    gt = gt.astype(jnp.float32)
    inter = jnp.sum(pred * gt, axis=(0, 2, 3))                            # (C,)
    sums = jnp.sum(pred, axis=(0, 2, 3)) + jnp.sum(gt, axis=(0, 2, 3))    # (C,)
    dice = (2.0 * inter + EPS) / (sums + EPS)
    return jnp.mean(dice[1:NUM_CLASSES])


def _make_inputs(key, B, H, W, gt_dtype):
    kp, kg = jax.random.split(key)
    pred = jax.nn.softmax(
        jax.random.normal(kp, (B, NUM_CLASSES, H, W), jnp.float32), axis=1)
    labels = jax.random.randint(kg, (B, H, W), 0, NUM_CLASSES)
    gt = jnp.transpose(jax.nn.one_hot(labels, NUM_CLASSES, dtype=gt_dtype),
                       (0, 3, 1, 2))
    return pred, gt


if __name__ == "__main__":
    k1, k2, k3 = jax.random.split(jax.random.PRNGKey(0), 3)

    # 1) Base case: 128-divisible HW, bf16 one-hot GT, single tile.
    pred, gt = _make_inputs(k1, 2, 16, 16, jnp.bfloat16)
    score = compute_dice_one_hot(pred, gt)
    jax.block_until_ready(score)
    ref = _reference(pred, gt)
    assert jnp.allclose(score, ref, rtol=1e-5, atol=1e-6), (score, ref)

    # 2) Multi-tile path: rows=10, tile=8 -> cdiv grid with masked tail tile.
    pred, gt = _make_inputs(k2, 2, 32, 40, jnp.float32)
    score = compute_dice_one_hot(pred, gt, max_tile_rows=8)
    jax.block_until_ready(score)
    ref = _reference(pred, gt)
    assert jnp.allclose(score, ref, rtol=1e-5, atol=1e-6), (score, ref)

    # 3) H*W not divisible by 128 -> zero-pad fallback path.
    pred, gt = _make_inputs(k3, 1, 19, 13, jnp.bfloat16)
    score = compute_dice_one_hot(pred, gt)
    jax.block_until_ready(score)
    ref = _reference(pred, gt)
    assert jnp.allclose(score, ref, rtol=1e-5, atol=1e-6), (score, ref)

    print("KERNEL_OK")
</pallas_src>

<mosaic_0001>
module attributes {stable_mosaic.version = 11 : i64} {
  func.func @kernel(%arg0: i32, %arg1: i32, %arg2: memref<1x5x2x128xf32, #tpu.memory_space<vmem>>, %arg3: memref<1x5x2x128xbf16, #tpu.memory_space<vmem>>, %arg4: memref<1x2x5x128xf32, #tpu.memory_space<vmem>>, %arg5: memref<5x128xf32, #tpu.memory_space<vmem>>, %arg6: memref<5x128xf32, #tpu.memory_space<vmem>>) attributes {dimension_semantics = [#tpu.dimension_semantics<parallel>, #tpu.dimension_semantics<arbitrary>], iteration_bounds = array<i64: 2, 1>, scalar_prefetch = 0 : i64, scratch_operands = 2 : i64, tpu.core_type = #tpu.core_type<tc>, window_params = [{transform_indices = @transform_0, window_bounds = array<i64: 1, 5, 2, 128>}, {transform_indices = @transform_1, window_bounds = array<i64: 1, 5, 2, 128>}, {transform_indices = @transform_2, window_bounds = array<i64: 1, 2, 5, 128>}]} {
    %c0_i32 = arith.constant 0 : i32
    %0 = arith.cmpi eq, %arg1, %c0_i32 : i32
    %1 = arith.extui %0 : i1 to i32
    %c0_i32_0 = arith.constant 0 : i32
    %2 = arith.cmpi ne, %1, %c0_i32_0 : i32
    scf.if %2 {
      %cst_19 = arith.constant 0.000000e+00 : f32
      %21 = vector.broadcast %cst_19 : f32 to vector<5x128xf32>
      %c0_20 = arith.constant 0 : index
      %c0_21 = arith.constant 0 : index
      %22 = vector.load %arg5[%c0_20, %c0_21] : memref<5x128xf32, #tpu.memory_space<vmem>>, vector<5x128xf32>
      tpu.vector_store %arg5[%c0_20, %c0_21], %21 {strides = array<i32>} : memref<5x128xf32, #tpu.memory_space<vmem>>, vector<5x128xf32>,
      %cst_22 = arith.constant 0.000000e+00 : f32
      %23 = vector.broadcast %cst_22 : f32 to vector<5x128xf32>
      %c0_23 = arith.constant 0 : index
      %c0_24 = arith.constant 0 : index
      %24 = vector.load %arg6[%c0_23, %c0_24] : memref<5x128xf32, #tpu.memory_space<vmem>>, vector<5x128xf32>
      tpu.vector_store %arg6[%c0_23, %c0_24], %23 {strides = array<i32>} : memref<5x128xf32, #tpu.memory_space<vmem>>, vector<5x128xf32>,
    } else {
    }
    %c0 = arith.constant 0 : index
    %c0_1 = arith.constant 0 : index
    %c0_2 = arith.constant 0 : index
    %c0_3 = arith.constant 0 : index
    %3 = vector.load %arg2[%c0, %c0_1, %c0_2, %c0_3] : memref<1x5x2x128xf32, #tpu.memory_space<vmem>>, vector<1x5x2x128xf32>
    %4 = vector.shape_cast %3 : vector<1x5x2x128xf32> to vector<5x2x128xf32>
    %c0_4 = arith.constant 0 : index
    %c0_5 = arith.constant 0 : index
    %c0_6 = arith.constant 0 : index
    %c0_7 = arith.constant 0 : index
    %5 = vector.load %arg3[%c0_4, %c0_5, %c0_6, %c0_7] : memref<1x5x2x128xbf16, #tpu.memory_space<vmem>>, vector<1x5x2x128xbf16>
    %6 = vector.shape_cast %5 : vector<1x5x2x128xbf16> to vector<5x2x128xbf16>
    %7 = arith.extf %6 : vector<5x2x128xbf16> to vector<5x2x128xf32>
    %8 = arith.mulf %4, %7 : vector<5x2x128xf32>
    %9 = arith.addf %4, %7 : vector<5x2x128xf32>
    %c0_8 = arith.constant 0 : index
    %c0_9 = arith.constant 0 : index
    %10 = vector.load %arg5[%c0_8, %c0_9] : memref<5x128xf32, #tpu.memory_space<vmem>>, vector<5x128xf32>
    %cst = arith.constant dense<0.000000e+00> : vector<5x128xf32>
    %11 = vector.multi_reduction <add>, %8, %cst [1] : vector<5x2x128xf32> to vector<5x128xf32>
    %12 = arith.addf %10, %11 : vector<5x128xf32>
    %c0_10 = arith.constant 0 : index
    %c0_11 = arith.constant 0 : index
    %13 = vector.load %arg5[%c0_10, %c0_11] : memref<5x128xf32, #tpu.memory_space<vmem>>, vector<5x128xf32>
    tpu.vector_store %arg5[%c0_10, %c0_11], %12 {strides = array<i32>} : memref<5x128xf32, #tpu.memory_space<vmem>>, vector<5x128xf32>,
    %c0_12 = arith.constant 0 : index
    %c0_13 = arith.constant 0 : index
    %14 = vector.load %arg6[%c0_12, %c0_13] : memref<5x128xf32, #tpu.memory_space<vmem>>, vector<5x128xf32>
    %cst_14 = arith.constant dense<0.000000e+00> : vector<5x128xf32>
    %15 = vector.multi_reduction <add>, %9, %cst_14 [1] : vector<5x2x128xf32> to vector<5x128xf32>
    %16 = arith.addf %14, %15 : vector<5x128xf32>
    %c0_15 = arith.constant 0 : index
    %c0_16 = arith.constant 0 : index
    %17 = vector.load %arg6[%c0_15, %c0_16] : memref<5x128xf32, #tpu.memory_space<vmem>>, vector<5x128xf32>
    tpu.vector_store %arg6[%c0_15, %c0_16], %16 {strides = array<i32>} : memref<5x128xf32, #tpu.memory_space<vmem>>, vector<5x128xf32>,
    %c0_i32_17 = arith.constant 0 : i32
    %18 = arith.cmpi eq, %arg1, %c0_i32_17 : i32
    %19 = arith.extui %18 : i1 to i32
    %c0_i32_18 = arith.constant 0 : i32
    %20 = arith.cmpi ne, %19, %c0_i32_18 : i32
    scf.if %20 {
      %c0_19 = arith.constant 0 : index
      %c0_20 = arith.constant 0 : index
      %21 = vector.load %arg5[%c0_19, %c0_20] : memref<5x128xf32, #tpu.memory_space<vmem>>, vector<5x128xf32>
      %c0_21 = arith.constant 0 : index
      %c0_22 = arith.constant 0 : index
      %c0_23 = arith.constant 0 : index
      %c0_24 = arith.constant 0 : index
      %22 = vector.load %arg4[%c0_21, %c0_22, %c0_23, %c0_24] : memref<1x2x5x128xf32, #tpu.memory_space<vmem>>, vector<1x1x5x128xf32>
      %23 = vector.shape_cast %22 : vector<1x1x5x128xf32> to vector<5x128xf32>
      %24 = vector.shape_cast %21 : vector<5x128xf32> to vector<1x1x5x128xf32>
      tpu.vector_store %arg4[%c0_21, %c0_22, %c0_23, %c0_24], %24 {strides = array<i32>} : memref<1x2x5x128xf32, #tpu.memory_space<vmem>>, vector<1x1x5x128xf32>,
      %c0_25 = arith.constant 0 : index
      %c0_26 = arith.constant 0 : index
      %25 = vector.load %arg6[%c0_25, %c0_26] : memref<5x128xf32, #tpu.memory_space<vmem>>, vector<5x128xf32>
      %c0_27 = arith.constant 0 : index
      %c1 = arith.constant 1 : index
      %c0_28 = arith.constant 0 : index
      %c0_29 = arith.constant 0 : index
      %26 = vector.load %arg4[%c0_27, %c1, %c0_28, %c0_29] : memref<1x2x5x128xf32, #tpu.memory_space<vmem>>, vector<1x1x5x128xf32>
      %27 = vector.shape_cast %26 : vector<1x1x5x128xf32> to vector<5x128xf32>
      %28 = vector.shape_cast %25 : vector<5x128xf32> to vector<1x1x5x128xf32>
      tpu.vector_store %arg4[%c0_27, %c1, %c0_28, %c0_29], %28 {strides = array<i32>} : memref<1x2x5x128xf32, #tpu.memory_space<vmem>>, vector<1x1x5x128xf32>,
    } else {
    }
    return
  }
  func.func @transform_0(%arg0: i32, %arg1: i32) -> (i32, i32, i32, i32) {
    %c0_i32 = arith.constant 0 : i32
    %c0_i32_0 = arith.constant 0 : i32
    %c0_i32_1 = arith.constant 0 : i32
    return %arg0, %c0_i32, %arg1, %c0_i32_0 : i32, i32, i32, i32
  }
  func.func @transform_1(%arg0: i32, %arg1: i32) -> (i32, i32, i32, i32) {
    %c0_i32 = arith.constant 0 : i32
    %c0_i32_0 = arith.constant 0 : i32
    %c0_i32_1 = arith.constant 0 : i32
    return %arg0, %c0_i32, %arg1, %c0_i32_0 : i32, i32, i32, i32
  }
  func.func @transform_2(%arg0: i32, %arg1: i32) -> (i32, i32, i32, i32) {
    %c0_i32 = arith.constant 0 : i32
    %c0_i32_0 = arith.constant 0 : i32
    %c0_i32_1 = arith.constant 0 : i32
    %c0_i32_2 = arith.constant 0 : i32
    return %arg0, %c0_i32, %c0_i32_0, %c0_i32_1 : i32, i32, i32, i32
  }
}

</mosaic_0001>

<llo_original>
// kernel: tpu_custom_call.1
$region0: #{tpu_custom_call.1}
  #allocation0 [shape = 'u32[]', space=smem, size = 0x4, offset = 0x4, fixed_abs, tag = 'smem constant byte address 0x4 - core index']
  #allocation1 [shape = 'u32[144,128]{1,0:T(1,128)}', space=vmem, size = 0x12000, scoped, tag = 'internal scratch']
  #allocation2 [shape = 'f32[5,128]{1,0:T(8,128)}', space=vmem, size = 0x1000, scoped, tag = 'scratch operand']
  #allocation3 [shape = 'f32[5,128]{1,0:T(8,128)}', space=vmem, size = 0x1000, scoped, tag = 'scratch operand']
  %s0 = inlined_call_operand.hbm [shape: f32[2,5,2,128], index: 0, kind: input, shape index: {}]
  %s1 = inlined_call_operand.hbm [shape: bf16[2,5,2,128], index: 1, kind: input, shape index: {}]
  %s2 = inlined_call_operand.vmem [shape: f32[2,2,5,128], index: 2, kind: output, shape index: {}]
  %s3 = sld [smem:[#allocation0]]
  $region57: #{tpu_custom_call.1} parent=0
    _
  %s5 = ssub.s32 1, %s3
  %s6 = scalar_select 0, %s5, %s3
  $region1: #{tpu_custom_call.1} parent=0
    #allocation4 [shape = 'u8[10240]{0}', space=vmem, size = 0x2800, scoped, tag = 'input window, operand 0']
    #allocation5 [shape = 's32[2]{0}', space=sflag, size = 0x8, scoped, tag = 'scoped memory for tpu_custom_call.1']
    #allocation6 [shape = 'u8[5120]{0}', space=vmem, size = 0x1400, scoped, tag = 'input window, operand 1']
    #allocation7 [shape = 's32[2]{0}', space=sflag, size = 0x8, scoped, tag = 'scoped memory for tpu_custom_call.1']
    %7 = vsyncpa [#allocation5], 0
    %s8 = scalar_lea.sflag [#allocation5], 1
    %9 = vsyncpa %s8, 0
    %10 = vsyncpa [#allocation7], 0
    %s11 = scalar_lea.sflag [#allocation7], 1
    %12 = vsyncpa %s11, 0
    loop: start=0, step=1, limit=4
    $region2: #{tpu_custom_call.1} parent=1 // loop_pre_header
      _
    $region3: #{tpu_custom_call.1} parent=1 // loop_header
      %s14 = sphi 0, %s18
      %p15 = scmp.ge.s32.totalorder %s14, 4
      %s21 = sphi 0, %s33
      %s22 = sphi 0, %s29
      %s23 = sphi 0, %s21
      %s24 = sphi 0, %s22
      %s25 = sphi 0, %s23
      %s26 = sphi 0, %s24
      %s38 = sphi 0, %s40
      %s41 = sphi 0, %s38
      %s42 = sphi 0, %s41
      %s58 = sphi 0, %s42
      %s66 = sphi 0, %s68
      %s69 = sphi 0, %s66
      %s70 = sphi 0, %s69
      %s86 = sphi 0, %s70
      %s92 = sphi 0, %s94
      %s95 = sphi 0, %s92
      %s96 = sphi 0, %s95
      %s112 = sphi 0, %s96
    $region4: #{tpu_custom_call.1} parent=1 // loop_header_branch
      %17 = sbr.rel (%p15) target = $region8
    $region5: #{tpu_custom_call.1} parent=1 // loop_body
      %s19 = ssub.s32 %s14, 1
      %s20 = ssub.s32 %s14, 2
      %s27 = sadd.s32 1, %s22
      %p28 = scmp.ge.s32.totalorder %s27, 1
      %s29 = scalar_select %p28, 0, %s27
      %s30 = sadd.s32 1, %s21
      %s31 = scalar_select %p28, %s30, %s21
      %p32 = scmp.ge.s32.totalorder %s31, 2
      %s33 = scalar_select %p32, 0, %s31
      %s34 = ssub.s32 %s21, %s33
      %s35 = ssub.s32 %s22, %s29
      %s36 = sor.u32 %s34, %s35
      %p37 = scmp.eq.s32.totalorder %s36, 0
      %s39 = sadd.s32 %s38, 1
      %s40 = scalar_select %p37, %s38, %s39
      %p43 = pneg %p37
      %p44 = scmp.eq.s32.totalorder %s14, 1
      %p45 = por %p43, %p44
      %p46 = scmp.ne.s32.totalorder %s38, %s41
      %p47 = scmp.eq.s32.totalorder %s14, 0
      %p48 = por %p46, %p47
      %p49 = scmp.ne.s32.totalorder %s38, %s41
      %p50 = scmp.eq.s32.totalorder %s19, 1
      %p51 = por %p49, %p50
      %p52 = scmp.ne.s32.totalorder %s41, %s42
      %p53 = scmp.eq.s32.totalorder %s19, 0
      %p54 = por %p52, %p53
      %p55 = scmp.ne.s32.totalorder %s41, %s42
      %p56 = scmp.eq.s32.totalorder %s20, 1
      %p57 = por %p55, %p56
      %p59 = scmp.ne.s32.totalorder %s42, %s58
      %p60 = scmp.eq.s32.totalorder %s20, 0
      %p61 = por %p59, %p60
      %s62 = ssub.s32 %s21, %s33
      %s63 = ssub.s32 %s22, %s29
      %s64 = sor.u32 %s62, %s63
      %p65 = scmp.eq.s32.totalorder %s64, 0
      %s67 = sadd.s32 %s66, 1
      %s68 = scalar_select %p65, %s66, %s67
      %p71 = pneg %p65
      %p72 = scmp.eq.s32.totalorder %s14, 1
      %p73 = por %p71, %p72
      %p74 = scmp.ne.s32.totalorder %s66, %s69
      %p75 = scmp.eq.s32.totalorder %s14, 0
      %p76 = por %p74, %p75
      %p77 = scmp.ne.s32.totalorder %s66, %s69
      %p78 = scmp.eq.s32.totalorder %s19, 1
      %p79 = por %p77, %p78
      %p80 = scmp.ne.s32.totalorder %s69, %s70
      %p81 = scmp.eq.s32.totalorder %s19, 0
      %p82 = por %p80, %p81
      %p83 = scmp.ne.s32.totalorder %s69, %s70
      %p84 = scmp.eq.s32.totalorder %s20, 1
      %p85 = por %p83, %p84
      %p87 = scmp.ne.s32.totalorder %s70, %s86
      %p88 = scmp.eq.s32.totalorder %s20, 0
      %p89 = por %p87, %p88
      %s90 = ssub.s32 %s21, %s33
      %p91 = scmp.eq.s32.totalorder %s90, 0
      %s93 = sadd.s32 %s92, 1
      %s94 = scalar_select %p91, %s92, %s93
      %p97 = pneg %p91
      %p98 = scmp.eq.s32.totalorder %s14, 1
      %p99 = por %p97, %p98
      %p100 = scmp.ne.s32.totalorder %s92, %s95
      %p101 = scmp.eq.s32.totalorder %s14, 0
      %p102 = por %p100, %p101
      %p103 = scmp.ne.s32.totalorder %s92, %s95
      %p104 = scmp.eq.s32.totalorder %s19, 1
      %p105 = por %p103, %p104
      %p106 = scmp.ne.s32.totalorder %s95, %s96
      %p107 = scmp.eq.s32.totalorder %s19, 0
      %p108 = por %p106, %p107
      %p109 = scmp.ne.s32.totalorder %s95, %s96
      %p110 = scmp.eq.s32.totalorder %s20, 1
      %p111 = por %p109, %p110
      %p113 = scmp.ne.s32.totalorder %s96, %s112
      %p114 = scmp.eq.s32.totalorder %s20, 0
      %p115 = por %p113, %p114
      %p116 = scmp.le.s32.totalorder 1, %s14
      %p117 = scmp.lt.s32.totalorder %s14, 3
      %p118 = pnand %p116, %p117
      %p119 = pneg %p118
      // Predicated region
      $region9: #{tpu_custom_call.1} parent=5 // pred_check
        _
      $region10: #{tpu_custom_call.1} parent=5 // pred_check_branch
        %121 = sbr.rel (%p118) target = $region12
      $region11: #{tpu_custom_call.1} parent=5 // pred_region
        %s122 = ssub.s32 %s14, 1
      $region12: #{tpu_custom_call.1} parent=5 // pred_fallthru
        _
      %p123 = scmp.lt.s32.totalorder %s14, 2
      // Predicated region
      $region13: #{tpu_custom_call.1} parent=5 // pred_check
        %p124 = pneg %p123
      $region14: #{tpu_custom_call.1} parent=5 // pred_check_branch
        %126 = sbr.rel (%p124) target = $region16
      $region15: #{tpu_custom_call.1} parent=5 // pred_region
        // Predicated region
        $region17: #{tpu_custom_call.1} parent=15 // pred_check
          %p127 = pneg %p48
        $region18: #{tpu_custom_call.1} parent=15 // pred_check_branch
          %129 = sbr.rel (%p127) target = $region20
        $region19: #{tpu_custom_call.1} parent=15 // pred_region
          %s130 = sand.u32 %s38, 1
          %s131 = scalar_lea.sflag [#allocation5], %s130
          %s132 = sand.u32 %s38, 1
          %s133 = smul.addr %s132, 10
          %s134 = scalar_lea.vmem [#allocation4], %s133
          %s136 = ssub.s32 160, 160
          %137 = vsyncadd %s131, %s136
          %s138 = smul.addr %s21, 5
          %s139 = sadd.s32 %s22, %s138
          %s140 = smul.addr %s139, 32
          %s141 = scalar_lea.hbm %s0, %s140
          %s142 = sshll.u32 %s134, 4
          %s143 = int_to_ptr.vmem [resolvable:$true] %s142
          %148 = dma.hbm_to_vmem [thread:$0]  %s141, 160, %s143, %s131, 32, 32, 2
        $region20: #{tpu_custom_call.1} parent=15 // pred_fallthru
          _
        // Predicated region
        $region21: #{tpu_custom_call.1} parent=15 // pred_check
          %p149 = pneg %p76
        $region22: #{tpu_custom_call.1} parent=15 // pred_check_branch
          %151 = sbr.rel (%p149) target = $region24
        $region23: #{tpu_custom_call.1} parent=15 // pred_region
          %s152 = sand.u32 %s66, 1
          %s153 = scalar_lea.sflag [#allocation7], %s152
          %s154 = sand.u32 %s66, 1
          %s155 = smul.addr %s154, 5
          %s156 = scalar_lea.vmem [#allocation6], %s155
          %s158 = ssub.s32 80, 80
          %159 = vsyncadd %s153, %s158
          %s160 = smul.addr %s21, 5
          %s161 = sadd.s32 %s22, %s160
          %s162 = smul.addr %s161, 16
          %s163 = scalar_lea.hbm %s1, %s162
          %s164 = sshll.u32 %s156, 4
          %s165 = int_to_ptr.vmem [resolvable:$true] %s164
          %170 = dma.hbm_to_vmem [thread:$0]  %s163, 80, %s165, %s153, 16, 16, 1
        $region24: #{tpu_custom_call.1} parent=15 // pred_fallthru
          _
      $region16: #{tpu_custom_call.1} parent=5 // pred_fallthru
        _
      %p171 = scmp.le.s32.totalorder 1, %s14
      %p172 = scmp.lt.s32.totalorder %s14, 3
      %p173 = pnand %p171, %p172
      %p174 = pneg %p173
      // Predicated region
      $region25: #{tpu_custom_call.1} parent=5 // pred_check
        _
      $region26: #{tpu_custom_call.1} parent=5 // pred_check_branch
        %176 = sbr.rel (%p173) target = $region28
      $region27: #{tpu_custom_call.1} parent=5 // pred_region
        %s177 = ssub.s32 %s14, 1
        %s178 = sand.u32 %s41, 1
        %s179 = scalar_lea.sflag [#allocation5], %s178
        %s180 = sand.u32 %s41, 1
        %s181 = smul.addr %s180, 10
        %s182 = scalar_lea.vmem [#allocation4], %s181
        // Predicated region
        $region29: #{tpu_custom_call.1} parent=27 // pred_check
          %p183 = pneg %p54
        $region30: #{tpu_custom_call.1} parent=27 // pred_check_branch
          %185 = sbr.rel (%p183) target = $region32
        $region31: #{tpu_custom_call.1} parent=27 // pred_region
          %186 = dma.done %s179, 160
        $region32: #{tpu_custom_call.1} parent=27 // pred_fallthru
          _
        %s187 = sand.u32 %s69, 1
        %s188 = scalar_lea.sflag [#allocation7], %s187
        %s189 = sand.u32 %s69, 1
        %s190 = smul.addr %s189, 5
        %s191 = scalar_lea.vmem [#allocation6], %s190
        // Predicated region
        $region33: #{tpu_custom_call.1} parent=27 // pred_check
          %p192 = pneg %p82
        $region34: #{tpu_custom_call.1} parent=27 // pred_check_branch
          %194 = sbr.rel (%p192) target = $region36
        $region35: #{tpu_custom_call.1} parent=27 // pred_region
          %195 = dma.done %s188, 80
        $region36: #{tpu_custom_call.1} parent=27 // pred_fallthru
          _
        %s196 = sand.u32 %s41, 1
        %s197 = scalar_lea.sflag [#allocation5], %s196
        %s198 = sand.u32 %s41, 1
        %s199 = smul.addr %s198, 10
        %s200 = scalar_lea.vmem [#allocation4], %s199
        %p201 = pneg %p54
        %p202 = pneg %p51
        %s203 = sand.u32 %s69, 1
        %s204 = scalar_lea.sflag [#allocation7], %s203
        %s205 = sand.u32 %s69, 1
        %s206 = smul.addr %s205, 5
        %s207 = scalar_lea.vmem [#allocation6], %s206
        %p208 = pneg %p82
        %p209 = pneg %p79
        %p210 = pneg %p108
        %p211 = pneg %p105
        %p212 = scmp.lt.s32.totalorder %s23, 1
        %s213 = scalar_select %p212, %s23, 1
        %s214 = smul.addr %s213, 2
        %s215 = smul.addr %s214, 8
        %s216 = scalar_lea.vmem %s2, %s215
        %p217 = scmp.lt.s32.totalorder %s23, 1
        %s218 = scalar_select %p217, %s23, 1
        %s219 = smul.addr %s218, 2
        %s220 = smul.addr %s219, 8
        %s221 = scalar_lea.vmem %s2, %s220
        %p222 = scmp.eq.s32.totalorder %s24, 0
        // Predicated region
        $region37: #{tpu_custom_call.1} parent=27 // pred_check
          %p223 = pneg %p222
        $region38: #{tpu_custom_call.1} parent=27 // pred_check_branch
          %225 = sbr.rel (%p223) target = $region40
        $region39: #{tpu_custom_call.1} parent=27 // pred_region
          %226 = vst [vmem:[#allocation2] sm:$0x1f] 0.0
          %227 = vst [vmem:[#allocation3] sm:$0x1f] 0.0
        $region40: #{tpu_custom_call.1} parent=27 // pred_fallthru
          _
        %v228 = vld [vmem:[%s182] sm:$0x3]
        %v229 = vld [vmem:[%s182 + $0x2] sm:$0x3]
        %v230 = vld [vmem:[%s182 + $0x4] sm:$0x3]
        %v231 = vld [vmem:[%s182 + $0x6] sm:$0x3]
        %v232 = vld [vmem:[%s182 + $0x8] sm:$0x3]
        %v233 = vld [vmem:[%s191] sm:$0x1]
        %v234 = vld [vmem:[%s191 + $0x1] sm:$0x1]
        %v235 = vld [vmem:[%s191 + $0x2] sm:$0x1]
        %v236 = vld [vmem:[%s191 + $0x3] sm:$0x1]
        %v237 = vld [vmem:[%s191 + $0x4] sm:$0x1]
        %v238 = vunpack.c.l.bf16 %v233
        %v239 = vunpack.c.l.bf16 %v234
        %v240 = vunpack.c.l.bf16 %v235
        %v241 = vunpack.c.l.bf16 %v236
        %v242 = vunpack.c.l.bf16 %v237
        %v243 = vmul.f32 %v228, %v238
        %v244 = vmul.f32 %v229, %v239
        %v245 = vmul.f32 %v230, %v240
        %v246 = vmul.f32 %v231, %v241
        %v247 = vmul.f32 %v232, %v242
        %v248 = vadd.f32 %v228, %v238
        %v249 = vadd.f32 %v229, %v239
        %v250 = vadd.f32 %v230, %v240
        %v251 = vadd.f32 %v231, %v241
        %v252 = vadd.f32 %v232, %v242
        %v253 = vld [vmem:[#allocation2] sm:$0x1f]
        %vm254 = vcmask 1041408
        %v255 = vsel %vm254, %v243, 0.0
        %v256 = vrot.slane %v255, 4
        %v257 = vadd.f32 %v255, %v256
        %v258 = vrot.slane %v257, 2
        %v259 = vadd.f32 %v257, %v258
        %v260 = vrot.slane %v259, 1
        %v261 = vadd.f32 %v259, %v260
        %v262 = vsel %vm254, %v244, 0.0
        %v263 = vrot.slane %v262, 4
        %v264 = vadd.f32 %v262, %v263
        %v265 = vrot.slane %v264, 2
        %v266 = vadd.f32 %v264, %v265
        %v267 = vrot.slane %v266, 1
        %v268 = vadd.f32 %v266, %v267
        %v269 = vsel %vm254, %v245, 0.0
        %v270 = vrot.slane %v269, 4
        %v271 = vadd.f32 %v269, %v270
        %v272 = vrot.slane %v271, 2
        %v273 = vadd.f32 %v271, %v272
        %v274 = vrot.slane %v273, 1
        %v275 = vadd.f32 %v273, %v274
        %v276 = vsel %vm254, %v246, 0.0
        %v277 = vrot.slane %v276, 4
        %v278 = vadd.f32 %v276, %v277
        %v279 = vrot.slane %v278, 2
        %v280 = vadd.f32 %v278, %v279
        %v281 = vrot.slane %v280, 1
        %v282 = vadd.f32 %v280, %v281
        %v283 = vsel %vm254, %v247, 0.0
        %v284 = vrot.slane %v283, 4
        %v285 = vadd.f32 %v283, %v284
        %v286 = vrot.slane %v285, 2
        %v287 = vadd.f32 %v285, %v286
        %v288 = vrot.slane %v287, 1
        %v289 = vadd.f32 %v287, %v288
        %vm295 = vcmask 1041409
        %v296 = vsel %vm295, %v268, %v261
        %vm297 = vcmask 1042434
        %v298 = vsel %vm297, %v275, %v296
        %vm299 = vcmask 1043459
        %v300 = vsel %vm299, %v282, %v298
        %vm301 = vcmask 1044484
        %v302 = vsel %vm301, %v289, %v300
        %v304 = vadd.f32 %v253, %v302
        %305 = vst [vmem:[#allocation2] sm:$0x1f] %v304
        %v306 = vld [vmem:[#allocation3] sm:$0x1f]
        %v307 = vsel %vm254, %v248, 0.0
        %v308 = vrot.slane %v307, 4
        %v309 = vadd.f32 %v307, %v308
        %v310 = vrot.slane %v309, 2
        %v311 = vadd.f32 %v309, %v310
        %v312 = vrot.slane %v311, 1
        %v313 = vadd.f32 %v311, %v312
        %v314 = vsel %vm254, %v249, 0.0
        %v315 = vrot.slane %v314, 4
        %v316 = vadd.f32 %v314, %v315
        %v317 = vrot.slane %v316, 2
        %v318 = vadd.f32 %v316, %v317
        %v319 = vrot.slane %v318, 1
        %v320 = vadd.f32 %v318, %v319
        %v321 = vsel %vm254, %v250, 0.0
        %v322 = vrot.slane %v321, 4
        %v323 = vadd.f32 %v321, %v322
        %v324 = vrot.slane %v323, 2
        %v325 = vadd.f32 %v323, %v324
        %v326 = vrot.slane %v325, 1
        %v327 = vadd.f32 %v325, %v326
        %v328 = vsel %vm254, %v251, 0.0
        %v329 = vrot.slane %v328, 4
        %v330 = vadd.f32 %v328, %v329
        %v331 = vrot.slane %v330, 2
        %v332 = vadd.f32 %v330, %v331
        %v333 = vrot.slane %v332, 1
        %v334 = vadd.f32 %v332, %v333
        %v335 = vsel %vm254, %v252, 0.0
        %v336 = vrot.slane %v335, 4
        %v337 = vadd.f32 %v335, %v336
        %v338 = vrot.slane %v337, 2
        %v339 = vadd.f32 %v337, %v338
        %v340 = vrot.slane %v339, 1
        %v341 = vadd.f32 %v339, %v340
        %v347 = vsel %vm295, %v320, %v313
        %v348 = vsel %vm297, %v327, %v347
        %v349 = vsel %vm299, %v334, %v348
        %v350 = vsel %vm301, %v341, %v349
        %v352 = vadd.f32 %v306, %v350
        %353 = vst [vmem:[#allocation3] sm:$0x1f] %v352
        // Predicated region
        $region41: #{tpu_custom_call.1} parent=27 // pred_check
          %p354 = pneg %p222
        $region42: #{tpu_custom_call.1} parent=27 // pred_check_branch
          %356 = sbr.rel (%p354) target = $region44
        $region43: #{tpu_custom_call.1} parent=27 // pred_region
          %v357 = vld [vmem:[#allocation2] sm:$0x1f]
          %358 = vst [vmem:[%s221] sm:$0x1f] %v357
          %v359 = vld [vmem:[#allocation3] sm:$0x1f]
          %s360 = scalar_lea.vmem %s221, 8
          %361 = vst [vmem:[%s360] sm:$0x1f] %v359
        $region44: #{tpu_custom_call.1} parent=27 // pred_fallthru
          _
        %p362 = scmp.lt.s32.totalorder %s23, 1
        %s363 = scalar_select %p362, %s23, 1
        %s364 = smul.addr %s363, 2
        %s365 = smul.addr %s364, 8
        %s366 = scalar_lea.vmem %s2, %s365
        // Predicated region
        $region45: #{tpu_custom_call.1} parent=27 // pred_check
          %p367 = pneg %p105
        $region46: #{tpu_custom_call.1} parent=27 // pred_check_branch
          %369 = sbr.rel (%p367) target = $region48
        $region47: #{tpu_custom_call.1} parent=27 // pred_region
          _
        $region48: #{tpu_custom_call.1} parent=27 // pred_fallthru
          _
      $region28: #{tpu_custom_call.1} parent=5 // pred_fallthru
        _
      %p370 = scmp.le.s32.totalorder 2, %s14
      // Predicated region
      $region49: #{tpu_custom_call.1} parent=5 // pred_check
        %p371 = pneg %p370
      $region50: #{tpu_custom_call.1} parent=5 // pred_check_branch
        %373 = sbr.rel (%p371) target = $region52
      $region51: #{tpu_custom_call.1} parent=5 // pred_region
        %s374 = ssub.s32 %s14, 2
        // Predicated region
        $region53: #{tpu_custom_call.1} parent=51 // pred_check
          %p375 = pneg %p111
        $region54: #{tpu_custom_call.1} parent=51 // pred_check_branch
          %377 = sbr.rel (%p375) target = $region56
        $region55: #{tpu_custom_call.1} parent=51 // pred_region
          %p378 = scmp.lt.s32.totalorder %s25, 1
          %s379 = scalar_select %p378, %s25, 1
          %s380 = smul.addr %s379, 2
          %s381 = smul.addr %s380, 8
          %s382 = scalar_lea.vmem %s2, %s381
        $region56: #{tpu_custom_call.1} parent=51 // pred_fallthru
          _
      $region52: #{tpu_custom_call.1} parent=5 // pred_fallthru
        _
    $region6: #{tpu_custom_call.1} parent=1 // loop_footer
      %s18 = sadd.s32 1, %s14
    $region7: #{tpu_custom_call.1} parent=1 // loop_footer_branch
      %13 = sbr.rel target = $region3
    $region8: #{tpu_custom_call.1} parent=1 // loop_exit
      _
    %383 = vsyncpa [#allocation5], 1
    %s384 = scalar_lea.sflag [#allocation5], 1
    %385 = vsyncpa %s384, 1
    %386 = vsyncpa [#allocation7], 1
    %s387 = scalar_lea.sflag [#allocation7], 1
    %388 = vsyncpa %s387, 1

</llo_original>
